<compile_context>
chip_gen: v6e
topology: v6e:2x2x1
jax: 0.10.0
libtpu: 0.0.40
codegen_flags: <defaults>
</compile_context>

<pallas_src>
import functools

import jax
import jax.numpy as jnp
import numpy as np
from jax import lax
from jax.experimental import pallas as pl
from jax.experimental.pallas import tpu as pltpu


def _ecc_crf_kernel(x_ref, bt_ref, e_hbm_ref, o_ref, e_vmem, e_sem,
                    *, nrepeats, n, c, f1):
    """Fused CRF-as-RNN forward.

    x_ref     : [N, C]      unaries (original input logits), VMEM
    bt_ref    : [C, F1*C]   basis filters, B_t[c, f*C + d] = B_f[c, d], bf16, VMEM
    e_hbm_ref : [N, N*F1]   fused edge coefficients E[i, j*F1 + f], bf16, HBM (pl.ANY)
    o_ref     : [N, C]      output Q, VMEM
    e_vmem    : [N, N*F1]   single-buffered VMEM scratch for the edge coefficients
    e_sem     : DMA completion semaphore
    """
    # Kick off the dominant edge-coefficient DMA immediately; it is hidden
    # behind the first repeat's softmax + basis matmul below.
    e_copy = pltpu.make_async_copy(e_hbm_ref, e_vmem, e_sem)
    e_copy.start()

    x = x_ref[...].astype(jnp.float32)          # [N, C] stays resident
    bt = bt_ref[...]                            # [C, F1*C] bf16

    def softmax_basis(q):
        # Channel softmax once per repeat on the whole block.
        q_max = jnp.max(q, axis=-1, keepdims=True)
        ex = jnp.exp(q - q_max)
        inv = pl.reciprocal(jnp.sum(ex, axis=-1, keepdims=True), approx=True)
        qs = ex * inv                           # [N, C] f32
        # P[j, f*C + d] = sum_c softmax(Q)[j, c] * B_f[c, d]   (lane-dense MXU)
        p = jnp.dot(qs.astype(bt.dtype), bt,
                    preferred_element_type=jnp.float32)          # [N, F1*C] f32
        # Pure row-major reshape: P_r[j*F1 + f, d] = P[j, f*C + d]
        return p.reshape(n * f1, c).astype(jnp.bfloat16)         # [N*F1, C] bf16

    def propagate(p_r):
        # prop[i, d] = sum_{j,f} E[i, j*F1 + f] * P_r[j*F1 + f, d]
        return jnp.dot(e_vmem[...], p_r, preferred_element_type=jnp.float32)

    # ---- repeat 0: edge DMA overlapped with the Q-only work ----
    p_r = softmax_basis(x)                      # softmax(x) == initial Q
    e_copy.wait()
    q = x - propagate(p_r)

    # ---- remaining repeats ----
    if nrepeats > 1:
        def body(_, q_cur):
            return x - propagate(softmax_basis(q_cur))
        if nrepeats <= 4:
            for _ in range(nrepeats - 1):       # small static count -> unroll
                q = body(0, q)
        else:                                   # large counts: bounded live ranges
            q = lax.fori_loop(0, nrepeats - 1, body, q)

    o_ref[...] = q.astype(o_ref.dtype)


def ecc_crf_forward(x, edge_feat, adj, fgn_w, fgn_b, nrepeats=1):
    """ECC_CRFModule.forward.  x: [N, C] node logits (unaries)."""
    N, C = x.shape
    F = edge_feat.shape[-1]
    F1 = F + 1

    if nrepeats == 0:
        # Module semantics: Q = softmax(input); loop never runs.
        return jax.nn.softmax(x, axis=1)

    # ---- Q-independent preprocessing (plain JAX, computed once) -------------
    # Mean-normalised adjacency folded into the per-edge feature coefficients.
    deg = jnp.maximum(jnp.sum(adj, axis=1, keepdims=True), 1.0)       # [N, 1]
    a_norm = adj / deg                                                # [N, N]
    e_aug = jnp.concatenate(
        [edge_feat, jnp.ones((N, N, 1), edge_feat.dtype)], axis=-1)   # [N, N, F+1]
    # Fused edge operand: E[i, j*F1 + f] = (A/deg)[i, j] * e_aug[i, j, f]  (bf16)
    e_fused = (e_aug * a_norm[:, :, None]).reshape(N, N * F1).astype(jnp.bfloat16)

    # Basis matrices of the filter-generating network (bf16 for the MXU):
    #   W[i, j] = sum_{f<F} e_ijf * fgn_w[f].reshape(C, C) + fgn_b.reshape(C, C)
    b_all = jnp.concatenate([fgn_w, fgn_b[None, :]], axis=0).reshape(F1, C, C)
    b_t = jnp.transpose(b_all, (1, 0, 2)).reshape(C, F1 * C).astype(jnp.bfloat16)

    # Explicit VMEM budget: x/bt/out blocks are pipeline double-buffered, the
    # edge operand is single-buffered scratch, plus working-set headroom.
    resident = (2 * N * C * 4 + 2 * b_t.size * 2 + 2 * N * C * 4
                + e_fused.size * 2 + 8 * N * F1 * C * 4)
    vmem_limit = int(min(max(4 * resident, 32 << 20), 64 << 20))

    flops = nrepeats * (2 * N * C * F1 * C + 2 * N * (N * F1) * C + 6 * N * C)
    bytes_accessed = N * C * 4 + e_fused.size * 2 + b_t.size * 2 + N * C * 4
    cost = pl.CostEstimate(flops=int(flops),
                           transcendentals=int(nrepeats * N * C),
                           bytes_accessed=int(bytes_accessed))

    kernel = functools.partial(_ecc_crf_kernel, nrepeats=nrepeats, n=N, c=C, f1=F1)
    return pl.pallas_call(
        kernel,
        out_shape=jax.ShapeDtypeStruct((N, C), x.dtype),
        grid=(1,),
        in_specs=[
            pl.BlockSpec((N, C), lambda i: (0, 0)),          # unaries -> VMEM
            pl.BlockSpec((C, F1 * C), lambda i: (0, 0)),     # basis filters (bf16) -> VMEM
            pl.BlockSpec(memory_space=pl.ANY),               # fused edge coeffs stay in HBM
        ],
        out_specs=pl.BlockSpec((N, C), lambda i: (0, 0)),
        scratch_shapes=[
            pltpu.VMEM((N, N * F1), jnp.bfloat16),           # single-buffered edge operand
            pltpu.SemaphoreType.DMA,
        ],
        compiler_params=pltpu.CompilerParams(
            dimension_semantics=("arbitrary",),
            vmem_limit_bytes=vmem_limit),
        cost_estimate=cost,
    )(x, b_t, e_fused)
    # TODO(synk): when (F+1)*N^2 exceeds the VMEM budget, tile the edge operand
    #   over destination rows with a 'parallel' grid axis (also engages the 2nd
    #   v7x TensorCore), keeping softmax(Q) in a persistent [N, C] scratch.
    # TODO(synk): on v7x, optionally quantize the edge coefficients to fp8
    #   (f32 accumulation) to halve their footprint again; re-validate tolerance.


def ecc_crf_reference(x, edge_feat, adj, fgn_w, fgn_b, nrepeats=1):
    """Pure-JAX reference mirroring the PyTorch module semantics (materialises W)."""
    N, C = x.shape
    w = (edge_feat.reshape(N * N, -1) @ fgn_w + fgn_b).reshape(N, N, C, C)
    deg = jnp.maximum(jnp.sum(adj, axis=1, keepdims=True), 1.0)
    w_edge = w * (adj / deg)[:, :, None, None]
    q = jax.nn.softmax(x, axis=1)                    # nnf.softmax(2-D) -> dim=1
    for i in range(nrepeats):
        q = jnp.einsum('jc,ijcd->id', q, w_edge)     # ECC propagation (mean aggregation)
        q = x - q
        if i < nrepeats - 1:
            q = jax.nn.softmax(q, axis=1)
    return q


if __name__ == "__main__":
    key = jax.random.PRNGKey(0)
    N, C, F = 8, 128, 8          # nodes, channels, edge-feature dim
    NREPEATS = 2

    k1, k2, k3, k4, k5 = jax.random.split(key, 5)
    x = jax.random.normal(k1, (N, C), jnp.float32)
    edge_feat = jax.random.normal(k2, (N, N, F), jnp.float32)
    adj = (jax.random.uniform(k3, (N, N)) < 0.5).astype(jnp.float32)
    adj = jnp.maximum(adj, jnp.eye(N, dtype=jnp.float32))   # self-loops
    # Deterministic "filter generating network" parameters: Linear(F -> C*C).
    fgn_w = 0.05 * jax.random.normal(k4, (F, C * C), jnp.float32)
    fgn_b = 0.05 * jax.random.normal(k5, (C * C,), jnp.float32)

    out = ecc_crf_forward(x, edge_feat, adj, fgn_w, fgn_b, NREPEATS)
    out = jax.block_until_ready(out)

    ref = ecc_crf_reference(x, edge_feat, adj, fgn_w, fgn_b, NREPEATS)
    assert out.shape == (N, C)
    # Tolerance accounts for bf16 basis + bf16 edge coefficients + approx recip.
    np.testing.assert_allclose(np.asarray(out), np.asarray(ref),
                               atol=5e-3, rtol=5e-3)
    print("KERNEL_OK")
</pallas_src>

<mosaic_0001>
module attributes {stable_mosaic.version = 11 : i64} {
  func.func @_ecc_crf_kernel(%arg0: i32, %arg1: memref<8x128xf32, #tpu.memory_space<vmem>>, %arg2: memref<128x1152xbf16, #tpu.memory_space<vmem>>, %arg3: memref<8x72xbf16, #tpu.memory_space<any>>, %arg4: memref<8x128xf32, #tpu.memory_space<vmem>>, %arg5: memref<8x72xbf16, #tpu.memory_space<vmem>>, %arg6: memref<!tpu.dma_semaphore, #tpu.memory_space<semaphore_mem>>) attributes {dimension_semantics = [#tpu.dimension_semantics<arbitrary>], iteration_bounds = array<i64: 1>, scalar_prefetch = 0 : i64, scratch_operands = 2 : i64, tpu.core_type = #tpu.core_type<tc>, window_params = [{pipeline_mode = #tpu.pipeline_mode<synchronous>, transform_indices = @transform_0, window_bounds = array<i64: 8, 128>}, {pipeline_mode = #tpu.pipeline_mode<synchronous>, transform_indices = @transform_1, window_bounds = array<i64: 128, 1152>}, {}, {pipeline_mode = #tpu.pipeline_mode<synchronous>, transform_indices = @transform_3, window_bounds = array<i64: 8, 128>}]} {
    tpu.enqueue_dma source(%arg3 : memref<8x72xbf16, #tpu.memory_space<any>>) target(%arg5 : memref<8x72xbf16, #tpu.memory_space<vmem>>) target_semaphore(%arg6 : memref<!tpu.dma_semaphore, #tpu.memory_space<semaphore_mem>>)
    %c0 = arith.constant 0 : index
    %c0_0 = arith.constant 0 : index
    %0 = vector.load %arg1[%c0, %c0_0] : memref<8x128xf32, #tpu.memory_space<vmem>>, vector<8x128xf32>
    %c0_1 = arith.constant 0 : index
    %c0_2 = arith.constant 0 : index
    %1 = vector.load %arg2[%c0_1, %c0_2] : memref<128x1152xbf16, #tpu.memory_space<vmem>>, vector<128x1152xbf16>
    %cst = arith.constant dense<0xFF800000> : vector<8xf32>
    %2 = vector.multi_reduction <maximumf>, %0, %cst [1] : vector<8x128xf32> to vector<8xf32>
    %3 = vector.shape_cast %2 : vector<8xf32> to vector<8x1xf32>
    %4 = vector.broadcast %3 : vector<8x1xf32> to vector<8x128xf32>
    %5 = arith.subf %0, %4 : vector<8x128xf32>
    %6 = math.exp %5 : vector<8x128xf32>
    %cst_3 = arith.constant dense<0.000000e+00> : vector<8xf32>
    %7 = vector.multi_reduction <add>, %6, %cst_3 [1] : vector<8x128xf32> to vector<8xf32>
    %8 = vector.shape_cast %7 : vector<8xf32> to vector<8x1xf32>
    %9 = tpu.reciprocal %8 {approx = true} : vector<8x1xf32> -> vector<8x1xf32>
    %10 = vector.broadcast %9 : vector<8x1xf32> to vector<8x128xf32>
    %11 = arith.mulf %6, %10 : vector<8x128xf32>
    %12 = arith.truncf %11 : vector<8x128xf32> to vector<8x128xbf16>
    %cst_4 = arith.constant dense<0.000000e+00> : vector<8x1152xf32>
    %13 = tpu.matmul %12, %1, %cst_4 {dimension_numbers = #tpu.dot_dimension_numbers<[1], [0], [0], [1], [0, 0, 1, 1], [], []>} : vector<8x128xbf16>, vector<128x1152xbf16>, vector<8x1152xf32> -> vector<8x1152xf32>
    %14 = vector.shape_cast %13 : vector<8x1152xf32> to vector<72x128xf32>
    %15 = arith.truncf %14 : vector<72x128xf32> to vector<72x128xbf16>
    tpu.wait_dma2 semaphore(%arg6 : memref<!tpu.dma_semaphore, #tpu.memory_space<semaphore_mem>>) src(%arg3 : memref<8x72xbf16, #tpu.memory_space<any>>) dst(%arg5 : memref<8x72xbf16, #tpu.memory_space<vmem>>)
    %c0_5 = arith.constant 0 : index
    %c0_6 = arith.constant 0 : index
    %16 = vector.load %arg5[%c0_5, %c0_6] : memref<8x72xbf16, #tpu.memory_space<vmem>>, vector<8x72xbf16>
    %cst_7 = arith.constant dense<0.000000e+00> : vector<8x128xf32>
    %17 = tpu.matmul %16, %15, %cst_7 {dimension_numbers = #tpu.dot_dimension_numbers<[1], [0], [0], [1], [0, 0, 1, 1], [], []>} : vector<8x72xbf16>, vector<72x128xbf16>, vector<8x128xf32> -> vector<8x128xf32>
    %18 = arith.subf %0, %17 : vector<8x128xf32>
    %cst_8 = arith.constant dense<0xFF800000> : vector<8xf32>
    %19 = vector.multi_reduction <maximumf>, %18, %cst_8 [1] : vector<8x128xf32> to vector<8xf32>
    %20 = vector.shape_cast %19 : vector<8xf32> to vector<8x1xf32>
    %21 = vector.broadcast %20 : vector<8x1xf32> to vector<8x128xf32>
    %22 = arith.subf %18, %21 : vector<8x128xf32>
    %23 = math.exp %22 : vector<8x128xf32>
    %cst_9 = arith.constant dense<0.000000e+00> : vector<8xf32>
    %24 = vector.multi_reduction <add>, %23, %cst_9 [1] : vector<8x128xf32> to vector<8xf32>
    %25 = vector.shape_cast %24 : vector<8xf32> to vector<8x1xf32>
    %26 = tpu.reciprocal %25 {approx = true} : vector<8x1xf32> -> vector<8x1xf32>
    %27 = vector.broadcast %26 : vector<8x1xf32> to vector<8x128xf32>
    %28 = arith.mulf %23, %27 : vector<8x128xf32>
    %29 = arith.truncf %28 : vector<8x128xf32> to vector<8x128xbf16>
    %cst_10 = arith.constant dense<0.000000e+00> : vector<8x1152xf32>
    %30 = tpu.matmul %29, %1, %cst_10 {dimension_numbers = #tpu.dot_dimension_numbers<[1], [0], [0], [1], [0, 0, 1, 1], [], []>} : vector<8x128xbf16>, vector<128x1152xbf16>, vector<8x1152xf32> -> vector<8x1152xf32>
    %31 = vector.shape_cast %30 : vector<8x1152xf32> to vector<72x128xf32>
    %32 = arith.truncf %31 : vector<72x128xf32> to vector<72x128xbf16>
    %c0_11 = arith.constant 0 : index
    %c0_12 = arith.constant 0 : index
    %33 = vector.load %arg5[%c0_11, %c0_12] : memref<8x72xbf16, #tpu.memory_space<vmem>>, vector<8x72xbf16>
    %cst_13 = arith.constant dense<0.000000e+00> : vector<8x128xf32>
    %34 = tpu.matmul %33, %32, %cst_13 {dimension_numbers = #tpu.dot_dimension_numbers<[1], [0], [0], [1], [0, 0, 1, 1], [], []>} : vector<8x72xbf16>, vector<72x128xbf16>, vector<8x128xf32> -> vector<8x128xf32>
    %35 = arith.subf %0, %34 : vector<8x128xf32>
    %c0_14 = arith.constant 0 : index
    %c0_15 = arith.constant 0 : index
    %36 = vector.load %arg4[%c0_14, %c0_15] : memref<8x128xf32, #tpu.memory_space<vmem>>, vector<8x128xf32>
    tpu.vector_store %arg4[%c0_14, %c0_15], %35 {strides = array<i32>} : memref<8x128xf32, #tpu.memory_space<vmem>>, vector<8x128xf32>,
    return
  }
  func.func @transform_0(%arg0: i32) -> (i32, i32) {
    %c0_i32 = arith.constant 0 : i32
    %c0_i32_0 = arith.constant 0 : i32
    %c0_i32_1 = arith.constant 0 : i32
    return %c0_i32, %c0_i32_0 : i32, i32
  }
  func.func @transform_1(%arg0: i32) -> (i32, i32) {
    %c0_i32 = arith.constant 0 : i32
    %c0_i32_0 = arith.constant 0 : i32
    %c0_i32_1 = arith.constant 0 : i32
    return %c0_i32, %c0_i32_0 : i32, i32
  }
  func.func @transform_3(%arg0: i32) -> (i32, i32) {
    %c0_i32 = arith.constant 0 : i32
    %c0_i32_0 = arith.constant 0 : i32
    %c0_i32_1 = arith.constant 0 : i32
    return %c0_i32, %c0_i32_0 : i32, i32
  }
}

</mosaic_0001>

<llo_original>
// kernel: tpu_custom_call.1
$region0: #{tpu_custom_call.1}
  #allocation0 [shape = 'u32[]', space=smem, size = 0x4, offset = 0x4, fixed_abs, tag = 'smem constant byte address 0x4 - core index']
  #allocation1 [shape = 'u32[144,128]{1,0:T(1,128)}', space=vmem, size = 0x12000, scoped, tag = 'internal scratch']
  #allocation2 [shape = 'bf16[8,72]{1,0:T(8,128)(2,1)}', space=vmem, size = 0x800, scoped, tag = 'scratch operand']
  #allocation3 [shape = 's32[1]{0}', space=sflag, size = 0x4, scoped, tag = 'scratch operand']
  #allocation10 [shape = 's32[]', space=sflag, size = 0x4, offset = 0, fixed_abs, tag = 'sflag constant byte address 0x0 - dummy sync flag']
  #allocation11 [shape = 's32[]', space=sflag, size = 0x4, offset = 0, fixed_abs, tag = 'sflag constant byte address 0x0 - dummy sync flag']
  #allocation12 [shape = 'u32[]', space=smem, size = 0x4, offset = 0x44, fixed_abs, tag = 'smem constant byte address 0x44 - assertion arg 0']
  #allocation13 [shape = 'u32[]', space=smem, size = 0x4, offset = 0x48, fixed_abs, tag = 'smem constant byte address 0x48 - assertion arg 1']
  %s0 = inlined_call_operand.hbm [shape: f32[8,128], index: 0, kind: input, shape index: {}]
  %s1 = inlined_call_operand.hbm [shape: bf16[128,1152], index: 1, kind: input, shape index: {}]
  %s2 = inlined_call_operand.hbm [shape: bf16[8,72], index: 2, kind: input, shape index: {}]
  %s3 = inlined_call_operand.hbm [shape: f32[8,128], index: 3, kind: output, shape index: {}]
  %s4 = sld [smem:[#allocation0]]
  $region30: #{tpu_custom_call.1} parent=0
    _
  %s6 = ssub.s32 1, %s4
  %s7 = scalar_select 0, %s6, %s4
  $region1: #{tpu_custom_call.1} parent=0
    #allocation4 [shape = 'u8[4096]{0}', space=vmem, size = 0x1000, scoped, tag = 'input window, operand 0, single buffered']
    #allocation5 [shape = 's32[1]{0}', space=sflag, size = 0x4, scoped, tag = 'scoped memory for tpu_custom_call.1']
    #allocation6 [shape = 's32[1]{0}', space=sflag, size = 0x4, scoped, tag = 'scoped memory for tpu_custom_call.1']
    #allocation7 [shape = 'u8[294912]{0}', space=vmem, size = 0x48000, scoped, tag = 'input window, operand 1, single buffered']
    #allocation8 [shape = 's32[1]{0}', space=sflag, size = 0x4, scoped, tag = 'scoped memory for tpu_custom_call.1']
    #allocation9 [shape = 'u8[4096]{0}', space=vmem, size = 0x1000, scoped, tag = 'output window, operand 0, single buffered']
    %8 = vsyncpa [#allocation5], 0
    %9 = vsyncpa [#allocation8], 0
    %10 = vsyncpa [#allocation6], 0
    // Predicated region
    $region2: #{tpu_custom_call.1} parent=1 // pred_check
      _
    $region3: #{tpu_custom_call.1} parent=1 // pred_check_branch
      %12 = sbr.rel (0) target = $region5
    $region4: #{tpu_custom_call.1} parent=1 // pred_region
      %s14 = ssub.s32 128, 128
      %15 = vsyncadd [#allocation5], %s14
      %s17 = sshll.u32 [#allocation4], 4
      %s18 = int_to_ptr.vmem [resolvable:$true] %s17
      %20 = dma.hbm_to_vmem [thread:$0]  %s0, 128, %s18, [#allocation5]
    $region5: #{tpu_custom_call.1} parent=1 // pred_fallthru
      _
    // Predicated region
    $region6: #{tpu_custom_call.1} parent=1 // pred_check
      _
    $region7: #{tpu_custom_call.1} parent=1 // pred_check_branch
      %22 = sbr.rel (0) target = $region9
    $region8: #{tpu_custom_call.1} parent=1 // pred_region
      %s24 = ssub.s32 9216, 9216
      %25 = vsyncadd [#allocation8], %s24
      %s26 = sshll.u32 [#allocation7], 4
      %s27 = int_to_ptr.vmem [resolvable:$true] %s26
      %32 = dma.hbm_to_vmem [thread:$0]  %s1, 9216, %s27, [#allocation8], 576, 576, 36
    $region9: #{tpu_custom_call.1} parent=1 // pred_fallthru
      _
    // Predicated region
    $region10: #{tpu_custom_call.1} parent=1 // pred_check
      _
    $region11: #{tpu_custom_call.1} parent=1 // pred_check_branch
      %34 = sbr.rel (0) target = $region13
    $region12: #{tpu_custom_call.1} parent=1 // pred_region
      %35 = dma.done [#allocation5], 128
    $region13: #{tpu_custom_call.1} parent=1 // pred_fallthru
      _
    // Predicated region
    $region14: #{tpu_custom_call.1} parent=1 // pred_check
      _
    $region15: #{tpu_custom_call.1} parent=1 // pred_check_branch
      %37 = sbr.rel (0) target = $region17
    $region16: #{tpu_custom_call.1} parent=1 // pred_region
      %38 = dma.done [#allocation8], 9216
    $region17: #{tpu_custom_call.1} parent=1 // pred_fallthru
      _
    // Predicated region
    $region18: #{tpu_custom_call.1} parent=1 // pred_check
      _
    $region19: #{tpu_custom_call.1} parent=1 // pred_check_branch
      %41 = sbr.rel target = $region21
    $region20: #{tpu_custom_call.1} parent=1 // pred_region
      %42 = sst [smem:[#allocation12]] [#allocation11]
      %43 = sst [smem:[#allocation13]] [#allocation10]
    $region21: #{tpu_custom_call.1} parent=1 // pred_fallthru
      _
    %45 = shalt.err (0)
    %s47 = sshll.u32 [#allocation2], 4
    %s48 = int_to_ptr.vmem [resolvable:$true] %s47
    %50 = dma.hbm_to_vmem [thread:$0]  %s2, 64, %s48, [#allocation3]
    %v51 = vld [vmem:[#allocation4] sm:$0xff]
    %v52 = vld [vmem:[#allocation7] sm:$0xff]
    %v53 = vld [vmem:[#allocation7 + $0x8] sm:$0xff]
    %v54 = vld [vmem:[#allocation7 + $0x10] sm:$0xff]
    %v55 = vld [vmem:[#allocation7 + $0x18] sm:$0xff]
    %v56 = vld [vmem:[#allocation7 + $0x20] sm:$0xf]
    %v57 = vld [vmem:[#allocation7 + $0x24] sm:$0xff]
    %v58 = vld [vmem:[#allocation7 + $0x2c] sm:$0xff]
    %v59 = vld [vmem:[#allocation7 + $0x34] sm:$0xff]
    %v60 = vld [vmem:[#allocation7 + $0x3c] sm:$0xff]
    %v61 = vld [vmem:[#allocation7 + $0x44] sm:$0xf]
    %v62 = vld [vmem:[#allocation7 + $0x48] sm:$0xff]
    %v63 = vld [vmem:[#allocation7 + $0x50] sm:$0xff]
    %v64 = vld [vmem:[#allocation7 + $0x58] sm:$0xff]
    %v65 = vld [vmem:[#allocation7 + $0x60] sm:$0xff]
    %v66 = vld [vmem:[#allocation7 + $0x68] sm:$0xf]
    %v67 = vld [vmem:[#allocation7 + $0x6c] sm:$0xff]
    %v68 = vld [vmem:[#allocation7 + $0x74] sm:$0xff]
    %v69 = vld [vmem:[#allocation7 + $0x7c] sm:$0xff]
    %v70 = vld [vmem:[#allocation7 + $0x84] sm:$0xff]
    %v71 = vld [vmem:[#allocation7 + $0x8c] sm:$0xf]
    %v72 = vld [vmem:[#allocation7 + $0x90] sm:$0xff]
    %v73 = vld [vmem:[#allocation7 + $0x98] sm:$0xff]
    %v74 = vld [vmem:[#allocation7 + $0xa0] sm:$0xff]
    %v75 = vld [vmem:[#allocation7 + $0xa8] sm:$0xff]
    %v76 = vld [vmem:[#allocation7 + $0xb0] sm:$0xf]
    %v77 = vld [vmem:[#allocation7 + $0xb4] sm:$0xff]
    %v78 = vld [vmem:[#allocation7 + $0xbc] sm:$0xff]
    %v79 = vld [vmem:[#allocation7 + $0xc4] sm:$0xff]
    %v80 = vld [vmem:[#allocation7 + $0xcc] sm:$0xff]
    %v81 = vld [vmem:[#allocation7 + $0xd4] sm:$0xf]
    %v82 = vld [vmem:[#allocation7 + $0xd8] sm:$0xff]
    %v83 = vld [vmem:[#allocation7 + $0xe0] sm:$0xff]
    %v84 = vld [vmem:[#allocation7 + $0xe8] sm:$0xff]
    %v85 = vld [vmem:[#allocation7 + $0xf0] sm:$0xff]
    %v86 = vld [vmem:[#allocation7 + $0xf8] sm:$0xf]
    %v87 = vld [vmem:[#allocation7 + $0xfc] sm:$0xff]
    %v88 = vld [vmem:[#allocation7 + $0x104] sm:$0xff]
    %v89 = vld [vmem:[#allocation7 + $0x10c] sm:$0xff]
    %v90 = vld [vmem:[#allocation7 + $0x114] sm:$0xff]
    %v91 = vld [vmem:[#allocation7 + $0x11c] sm:$0xf]
    %v92 = vld [vmem:[#allocation7 + $0x120] sm:$0xff]
    %v93 = vld [vmem:[#allocation7 + $0x128] sm:$0xff]
    %v94 = vld [vmem:[#allocation7 + $0x130] sm:$0xff]
    %v95 = vld [vmem:[#allocation7 + $0x138] sm:$0xff]
    %v96 = vld [vmem:[#allocation7 + $0x140] sm:$0xf]
    %v97 = vld [vmem:[#allocation7 + $0x144] sm:$0xff]
    %v98 = vld [vmem:[#allocation7 + $0x14c] sm:$0xff]
    %v99 = vld [vmem:[#allocation7 + $0x154] sm:$0xff]
    %v100 = vld [vmem:[#allocation7 + $0x15c] sm:$0xff]
    %v101 = vld [vmem:[#allocation7 + $0x164] sm:$0xf]
    %v102 = vld [vmem:[#allocation7 + $0x168] sm:$0xff]
    %v103 = vld [vmem:[#allocation7 + $0x170] sm:$0xff]
    %v104 = vld [vmem:[#allocation7 + $0x178] sm:$0xff]
    %v105 = vld [vmem:[#allocation7 + $0x180] sm:$0xff]
    %v106 = vld [vmem:[#allocation7 + $0x188] sm:$0xf]
    %v107 = vld [vmem:[#allocation7 + $0x18c] sm:$0xff]
    %v108 = vld [vmem:[#allocation7 + $0x194] sm:$0xff]
    %v109 = vld [vmem:[#allocation7 + $0x19c] sm:$0xff]
    %v110 = vld [vmem:[#allocation7 + $0x1a4] sm:$0xff]
    %v111 = vld [vmem:[#allocation7 + $0x1ac] sm:$0xf]
    %v112 = vld [vmem:[#allocation7 + $0x1b0] sm:$0xff]
    %v113 = vld [vmem:[#allocation7 + $0x1b8] sm:$0xff]
    %v114 = vld [vmem:[#allocation7 + $0x1c0] sm:$0xff]
    %v115 = vld [vmem:[#allocation7 + $0x1c8] sm:$0xff]
    %v116 = vld [vmem:[#allocation7 + $0x1d0] sm:$0xf]
    %v117 = vld [vmem:[#allocation7 + $0x1d4] sm:$0xff]
    %v118 = vld [vmem:[#allocation7 + $0x1dc] sm:$0xff]
    %v119 = vld [vmem:[#allocation7 + $0x1e4] sm:$0xff]
    %v120 = vld [vmem:[#allocation7 + $0x1ec] sm:$0xff]
    %v121 = vld [vmem:[#allocation7 + $0x1f4] sm:$0xf]
    %v122 = vld [vmem:[#allocation7 + $0x1f8] sm:$0xff]
    %v123 = vld [vmem:[#allocation7 + $0x200] sm:$0xff]
    %v124 = vld [vmem:[#allocation7 + $0x208] sm:$0xff]
    %v125 = vld [vmem:[#allocation7 + $0x210] sm:$0xff]
    %v126 = vld [vmem:[#allocation7 + $0x218] sm:$0xf]
    %v127 = vld [vmem:[#allocation7 + $0x21c] sm:$0xff]
    %v128 = vld [vmem:[#allocation7 + $0x224] sm:$0xff]
    %v129 = vld [vmem:[#allocation7 + $0x22c] sm:$0xff]
    %v130 = vld [vmem:[#allocation7 + $0x234] sm:$0xff]
    %v131 = vld [vmem:[#allocation7 + $0x23c] sm:$0xf]
    %132 = vmax.xlane.f32.xlu0 %v51
    %v133 = vpop.xlane.xlu0 %132
    %v134 = vsub.f32 %v51, %v133
    %v135 = vmul.f32 %v134, 1.442695
    %v136 = vpow.pop %v135
    %137 = vadd.xlane.f32.xlu0 %v136
    %v138 = vpop.xlane.xlu0 %137
    %v139 = vrcp.pop %v138
    %v140 = vmul.f32 %v136, %v139
    %v141 = vpack.c.bf16 %v140, %v140
    %v222 = vunpack.c.l.b16 %v52
    %v223 = vunpack.c.h.b16 %v52
    %v224 = vunpack.c.l.b16 %v53
    %v225 = vunpack.c.h.b16 %v53
    %v226 = vunpack.c.l.b16 %v54
    %v227 = vunpack.c.h.b16 %v54
    %v228 = vunpack.c.l.b16 %v55
    %v229 = vunpack.c.h.b16 %v55
    %v230 = vunpack.c.l.b16 %v56
    %v231 = vunpack.c.l.b16 %v57
    %v232 = vunpack.c.h.b16 %v57
    %v233 = vunpack.c.l.b16 %v58
    %v234 = vunpack.c.h.b16 %v58
    %v235 = vunpack.c.l.b16 %v59
    %v236 = vunpack.c.h.b16 %v59
    %v237 = vunpack.c.l.b16 %v60
    %v238 = vunpack.c.h.b16 %v60
    %v239 = vunpack.c.l.b16 %v61
    %v240 = vunpack.c.l.b16 %v62
    %v241 = vunpack.c.h.b16 %v62
    %v242 = vunpack.c.l.b16 %v63
    %v243 = vunpack.c.h.b16 %v63
    %v244 = vunpack.c.l.b16 %v64
    %v245 = vunpack.c.h.b16 %v64
    %v246 = vunpack.c.l.b16 %v65
    %v247 = vunpack.c.h.b16 %v65
    %v248 = vunpack.c.l.b16 %v66
    %v249 = vunpack.c.l.b16 %v67
    %v250 = vunpack.c.h.b16 %v67
    %v251 = vunpack.c.l.b16 %v68
    %v252 = vunpack.c.h.b16 %v68
    %v253 = vunpack.c.l.b16 %v69
    %v254 = vunpack.c.h.b16 %v69
    %v255 = vunpack.c.l.b16 %v70
    %v256 = vunpack.c.h.b16 %v70
    %v257 = vunpack.c.l.b16 %v71
    %v258 = vunpack.c.l.b16 %v72
    %v259 = vunpack.c.h.b16 %v72
    %v260 = vunpack.c.l.b16 %v73
    %v261 = vunpack.c.h.b16 %v73
    %v262 = vunpack.c.l.b16 %v74
    %v263 = vunpack.c.h.b16 %v74
    %v264 = vunpack.c.l.b16 %v75
    %v265 = vunpack.c.h.b16 %v75
    %v266 = vunpack.c.l.b16 %v76
    %v267 = vunpack.c.l.b16 %v77
    %v268 = vunpack.c.h.b16 %v77
    %v269 = vunpack.c.l.b16 %v78
    %v270 = vunpack.c.h.b16 %v78
    %v271 = vunpack.c.l.b16 %v79
    %v272 = vunpack.c.h.b16 %v79
    %v273 = vunpack.c.l.b16 %v80
    %v274 = vunpack.c.h.b16 %v80
    %v275 = vunpack.c.l.b16 %v81
    %v276 = vunpack.c.l.b16 %v82
    %v277 = vunpack.c.h.b16 %v82
    %v278 = vunpack.c.l.b16 %v83
    %v279 = vunpack.c.h.b16 %v83
    %v280 = vunpack.c.l.b16 %v84
    %v281 = vunpack.c.h.b16 %v84
    %v282 = vunpack.c.l.b16 %v85
    %v283 = vunpack.c.h.b16 %v85
    %v284 = vunpack.c.l.b16 %v86
    %v285 = vunpack.c.l.b16 %v87
    %v286 = vunpack.c.h.b16 %v87
    %v287 = vunpack.c.l.b16 %v88
    %v288 = vunpack.c.h.b16 %v88
    %v289 = vunpack.c.l.b16 %v89
    %v290 = vunpack.c.h.b16 %v89
    %v291 = vunpack.c.l.b16 %v90
    %v292 = vunpack.c.h.b16 %v90
    %v293 = vunpack.c.l.b16 %v91
    %v294 = vunpack.c.l.b16 %v92
    %v295 = vunpack.c.h.b16 %v92
    %v296 = vunpack.c.l.b16 %v93
    %v297 = vunpack.c.h.b16 %v93
    %v298 = vunpack.c.l.b16 %v94
    %v299 = vunpack.c.h.b16 %v94
    %v300 = vunpack.c.l.b16 %v95
    %v301 = vunpack.c.h.b16 %v95
    %v302 = vunpack.c.l.b16 %v96
    %v303 = vunpack.c.l.b16 %v97
    %v304 = vunpack.c.h.b16 %v97
    %v305 = vunpack.c.l.b16 %v98
    %v306 = vunpack.c.h.b16 %v98
    %v307 = vunpack.c.l.b16 %v99
    %v308 = vunpack.c.h.b16 %v99
    %v309 = vunpack.c.l.b16 %v100
    %v310 = vunpack.c.h.b16 %v100
    %v311 = vunpack.c.l.b16 %v101
    %v312 = vunpack.c.l.b16 %v102
    %v313 = vunpack.c.h.b16 %v102
    %v314 = vunpack.c.l.b16 %v103
    %v315 = vunpack.c.h.b16 %v103
    %v316 = vunpack.c.l.b16 %v104
    %v317 = vunpack.c.h.b16 %v104
    %v318 = vunpack.c.l.b16 %v105
    %v319 = vunpack.c.h.b16 %v105
    %v320 = vunpack.c.l.b16 %v106
    %v321 = vunpack.c.l.b16 %v107
    %v322 = vunpack.c.h.b16 %v107
    %v323 = vunpack.c.l.b16 %v108
    %v324 = vunpack.c.h.b16 %v108
    %v325 = vunpack.c.l.b16 %v109
    %v326 = vunpack.c.h.b16 %v109
    %v327 = vunpack.c.l.b16 %v110
    %v328 = vunpack.c.h.b16 %v110
    %v329 = vunpack.c.l.b16 %v111
    %v330 = vunpack.c.l.b16 %v112
    %v331 = vunpack.c.h.b16 %v112
    %v332 = vunpack.c.l.b16 %v113
    %v333 = vunpack.c.h.b16 %v113
    %v334 = vunpack.c.l.b16 %v114
    %v335 = vunpack.c.h.b16 %v114
    %v336 = vunpack.c.l.b16 %v115
    %v337 = vunpack.c.h.b16 %v115
    %v338 = vunpack.c.l.b16 %v116
    %v339 = vunpack.c.l.b16 %v117
    %v340 = vunpack.c.h.b16 %v117
    %v341 = vunpack.c.l.b16 %v118
    %v342 = vunpack.c.h.b16 %v118
    %v343 = vunpack.c.l.b16 %v119
    %v344 = vunpack.c.h.b16 %v119
    %v345 = vunpack.c.l.b16 %v120
    %v346 = vunpack.c.h.b16 %v120
    %v347 = vunpack.c.l.b16 %v121
    %v348 = vunpack.c.l.b16 %v122
    %v349 = vunpack.c.h.b16 %v122
    %v350 = vunpack.c.l.b16 %v123
    %v351 = vunpack.c.h.b16 %v123
    %v352 = vunpack.c.l.b16 %v124
    %v353 = vunpack.c.h.b16 %v124
    %v354 = vunpack.c.l.b16 %v125
    %v355 = vunpack.c.h.b16 %v125
    %v356 = vunpack.c.l.b16 %v126
    %v357 = vunpack.c.l.b16 %v127
    %v358 = vunpack.c.h.b16 %v127
    %v359 = vunpack.c.l.b16 %v128
    %v360 = vunpack.c.h.b16 %v128
    %v361 = vunpack.c.l.b16 %v129
    %v362 = vunpack.c.h.b16 %v129
    %v363 = vunpack.c.l.b16 %v130
    %v364 = vunpack.c.h.b16 %v130
    %v365 = vunpack.c.l.b16 %v131
    %v366 = vpack.c.b16 %v231, %v222
    %v367 = vpack.c.b16 %v232, %v223
    %v368 = vpack.c.b16 %v233, %v224
    %v369 = vpack.c.b16 %v234, %v225
    %v370 = vpack.c.b16 %v235, %v226
    %v371 = vpack.c.b16 %v236, %v227
    %v372 = vpack.c.b16 %v237, %v228
    %v373 = vpack.c.b16 %v238, %v229
    %v374 = vpack.c.b16 %v239, %v230
    %v375 = vpack.c.b16 %v249, %v240
    %v376 = vpack.c.b16 %v250, %v241
    %v377 = vpack.c.b16 %v251, %v242
    %v378 = vpack.c.b16 %v252, %v243
    %v379 = vpack.c.b16 %v253, %v244
    %v380 = vpack.c.b16 %v254, %v245
    %v381 = vpack.c.b16 %v255, %v246
    %v382 = vpack.c.b16 %v256, %v247
    %v383 = vpack.c.b16 %v257, %v248
    %v384 = vpack.c.b16 %v267, %v258
    %v385 = vpack.c.b16 %v268, %v259
    %v386 = vpack.c.b16 %v269, %v260
    %v387 = vpack.c.b16 %v270, %v261
    %v388 = vpack.c.b16 %v271, %v262
    %v389 = vpack.c.b16 %v272, %v263
    %v390 = vpack.c.b16 %v273, %v264
    %v391 = vpack.c.b16 %v274, %v265
    %v392 = vpack.c.b16 %v275, %v266
    %v393 = vpack.c.b16 %v285, %v276
    %v394 = vpack.c.b16 %v286, %v277
    %v395 = vpack.c.b16 %v287, %v278
    %v396 = vpack.c.b16 %v288, %v279
    %v397 = vpack.c.b16 %v289, %v280
    %v398 = vpack.c.b16 %v290, %v281
    %v399 = vpack.c.b16 %v291, %v282
    %v400 = vpack.c.b16 %v292, %v283
    %v401 = vpack.c.b16 %v293, %v284
    %v402 = vpack.c.b16 %v303, %v294
    %v403 = vpack.c.b16 %v304, %v295
    %v404 = vpack.c.b16 %v305, %v296
    %v405 = vpack.c.b16 %v306, %v297
    %v406 = vpack.c.b16 %v307, %v298
    %v407 = vpack.c.b16 %v308, %v299
    %v408 = vpack.c.b16 %v309, %v300
    %v409 = vpack.c.b16 %v310, %v301
    %v410 = vpack.c.b16 %v311, %v302
    %v411 = vpack.c.b16 %v321, %v312
    %v412 = vpack.c.b16 %v322, %v313
    %v413 = vpack.c.b16 %v323, %v314
    %v414 = vpack.c.b16 %v324, %v315
    %v415 = vpack.c.b16 %v325, %v316
    %v416 = vpack.c.b16 %v326, %v317
    %v417 = vpack.c.b16 %v327, %v318
    %v418 = vpack.c.b16 %v328, %v319
    %v419 = vpack.c.b16 %v329, %v320
    %v420 = vpack.c.b16 %v339, %v330
    %v421 = vpack.c.b16 %v340, %v331
    %v422 = vpack.c.b16 %v341, %v332
    %v423 = vpack.c.b16 %v342, %v333
    %v424 = vpack.c.b16 %v343, %v334
    %v425 = vpack.c.b16 %v344, %v335
    %v426 = vpack.c.b16 %v345, %v336
    %v427 = vpack.c.b16 %v346, %v337
    %v428 = vpack.c.b16 %v347, %v338
    %v429 = vpack.c.b16 %v357, %v348
    %v430 = vpack.c.b16 %v358, %v349
    %v431 = vpack.c.b16 %v359, %v350
    %v432 = vpack.c.b16 %v360, %v351
    %v433 = vpack.c.b16 %v361, %v352
    %v434 = vpack.c.b16 %v362, %v353
    %v435 = vpack.c.b16 %v363, %v354
    %v436 = vpack.c.b16 %v364, %v355
    %v437 = vpack.c.b16 %v365, %v356
    %510 = vmatprep.subr.bf16.mxu0 %v430
    %511 = vmatpush1.bf16.msra.mxu0 %v429
    %512 = vmatprep.subr.bf16.mxu0 %v421
    %513 = vmatpush1.bf16.msra.mxu0 %v420
    %514 = vmatprep.subr.bf16.mxu0 %v412
    %515 = vmatpush1.bf16.msra.mxu0 %v411
    %516 = vmatprep.subr.bf16.mxu0 %v403
    %517 = vmatpush1.bf16.msra.mxu0 %v402
    %518 = vmatprep.subr.bf16.mxu0 %v394
    %519 = vmatpush1.bf16.msra.mxu0 %v393
    %520 = vmatprep.subr.bf16.mxu0 %v385
    %521 = vmatpush1.bf16.msra.mxu0 %v384
    %522 = vmatprep.subr.bf16.mxu0 %v376
    %523 = vmatpush1.bf16.msra.mxu0 %v375
    %524 = vmatprep.subr.bf16.mxu0 %v367
    %525 = vmatpush1.bf16.msra.mxu0 %v366
    %526 = vmatprep.subr.bf16.mxu0 0
    %527 = vmatpush2.bf16.msra.mxu0 0
    %528 = vmatprep.subr.bf16.mxu0 0
    %529 = vmatpush2.bf16.msra.mxu0 0
    %530 = vmatprep.subr.bf16.mxu0 0
    %531 = vmatpush2.bf16.msra.mxu0 0
    %532 = vmatprep.subr.bf16.mxu0 0
    %533 = vmatpush2.bf16.msra.mxu0 0
    %534 = vmatprep.subr.bf16.mxu0 0
    %535 = vmatpush2.bf16.msra.mxu0 0
    %536 = vmatprep.subr.bf16.mxu0 0
    %537 = vmatpush2.bf16.msra.mxu0 0
    %538 = vmatprep.subr.bf16.mxu0 0
    %539 = vmatpush2.bf16.msra.mxu0 0
    %540 = vmatprep.subr.bf16.mxu0 0
    %541 = vmatpush2.bf16.msra.mxu0 0
    %542 = vmatprep.mubr.bf16.mxu0 0
    %543 = vmatmul.mubr.bf16.gmra.mxu0 %v141
    %v544 = vpop.f32.mrf.mxu0
    %v545 = vadd.f32 0.0, %v544
    %v546 = vpop.f32.mrf.mxu0
    %v547 = vadd.f32 0.0, %v546
    %v548 = vpop.f32.mrf.mxu0
    %v549 = vpop.f32.mrf.mxu0
    %550 = vdwg.mxu0
    %551 = vmatprep.subr.bf16.mxu0 %v432
    %552 = vmatpush1.bf16.msra.mxu0 %v431
    %553 = vmatprep.subr.bf16.mxu0 %v423
    %554 = vmatpush1.bf16.msra.mxu0 %v422
    %555 = vmatprep.subr.bf16.mxu0 %v414
    %556 = vmatpush1.bf16.msra.mxu0 %v413
    %557 = vmatprep.subr.bf16.mxu0 %v405
    %558 = vmatpush1.bf16.msra.mxu0 %v404
    %559 = vmatprep.subr.bf16.mxu0 %v396
    %560 = vmatpush1.bf16.msra.mxu0 %v395
    %561 = vmatprep.subr.bf16.mxu0 %v387
    %562 = vmatpush1.bf16.msra.mxu0 %v386
    %563 = vmatprep.subr.bf16.mxu0 %v378
    %564 = vmatpush1.bf16.msra.mxu0 %v377
    %565 = vmatprep.subr.bf16.mxu0 %v369
    %566 = vmatpush1.bf16.msra.mxu0 %v368
    %567 = vmatprep.subr.bf16.mxu0 0
    %568 = vmatpush2.bf16.msra.mxu0 0
    %569 = vmatprep.subr.bf16.mxu0 0
    %570 = vmatpush2.bf16.msra.mxu0 0
    %571 = vmatprep.subr.bf16.mxu0 0
    %572 = vmatpush2.bf16.msra.mxu0 0
    %573 = vmatprep.subr.bf16.mxu0 0
    %574 = vmatpush2.bf16.msra.mxu0 0
    %575 = vmatprep.subr.bf16.mxu0 0
    %576 = vmatpush2.bf16.msra.mxu0 0
    %577 = vmatprep.subr.bf16.mxu0 0
    %578 = vmatpush2.bf16.msra.mxu0 0
    %579 = vmatprep.subr.bf16.mxu0 0
    %580 = vmatpush2.bf16.msra.mxu0 0
    %581 = vmatprep.subr.bf16.mxu0 0
    %582 = vmatpush2.bf16.msra.mxu0 0
    %583 = vmatprep.mubr.bf16.mxu0 0
    %584 = vmatmul.mubr.bf16.gmra.mxu0 %v141
    %v585 = vpop.f32.mrf.mxu0
    %v586 = vadd.f32 0.0, %v585
    %v587 = vpop.f32.mrf.mxu0
    %v588 = vadd.f32 0.0, %v587
    %v589 = vpop.f32.mrf.mxu0
    %v590 = vpop.f32.mrf.mxu0
    %591 = vdwg.mxu0
    %592 = vmatprep.subr.bf16.mxu0 %v434
    %593 = vmatpush1.bf16.msra.mxu0 %v433
    %594 = vmatprep.subr.bf16.mxu0 %v425
    %595 = vmatpush1.bf16.msra.mxu0 %v424
    %596 = vmatprep.subr.bf16.mxu0 %v416
    %597 = vmatpush1.bf16.msra.mxu0 %v415
    %598 = vmatprep.subr.bf16.mxu0 %v407
    %599 = vmatpush1.bf16.msra.mxu0 %v406
    %600 = vmatprep.subr.bf16.mxu0 %v398
    %601 = vmatpush1.bf16.msra.mxu0 %v397
    %602 = vmatprep.subr.bf16.mxu0 %v389
    %603 = vmatpush1.bf16.msra.mxu0 %v388
    %604 = vmatprep.subr.bf16.mxu0 %v380
    %605 = vmatpush1.bf16.msra.mxu0 %v379
    %606 = vmatprep.subr.bf16.mxu0 %v371
    %607 = vmatpush1.bf16.msra.mxu0 %v370
    %608 = vmatprep.subr.bf16.mxu0 0
    %609 = vmatpush2.bf16.msra.mxu0 0
    %610 = vmatprep.subr.bf16.mxu0 0
    %611 = vmatpush2.bf16.msra.mxu0 0
    %612 = vmatprep.subr.bf16.mxu0 0
    %613 = vmatpush2.bf16.msra.mxu0 0
    %614 = vmatprep.subr.bf16.mxu0 0
    %615 = vmatpush2.bf16.msra.mxu0 0
    %616 = vmatprep.subr.bf16.mxu0 0
    %617 = vmatpush2.bf16.msra.mxu0 0
    %618 = vmatprep.subr.bf16.mxu0 0
    %619 = vmatpush2.bf16.msra.mxu0 0
    %620 = vmatprep.subr.bf16.mxu0 0
    %621 = vmatpush2.bf16.msra.mxu0 0
    %622 = vmatprep.subr.bf16.mxu0 0
    %623 = vmatpush2.bf16.msra.mxu0 0
    %624 = vmatprep.mubr.bf16.mxu0 0
    %625 = vmatmul.mubr.bf16.gmra.mxu0 %v141
    %v626 = vpop.f32.mrf.mxu0
    %v627 = vadd.f32 0.0, %v626
    %v628 = vpop.f32.mrf.mxu0
    %v629 = vadd.f32 0.0, %v628
    %v630 = vpop.f32.mrf.mxu0
    %v631 = vpop.f32.mrf.mxu0
    %632 = vdwg.mxu0
    %633 = vmatprep.subr.bf16.mxu0 %v436
    %634 = vmatpush1.bf16.msra.mxu0 %v435
    %635 = vmatprep.subr.bf16.mxu0 %v427
    %636 = vmatpush1.bf16.msra.mxu0 %v426
    %637 = vmatprep.subr.bf16.mxu0 %v418
    %638 = vmatpush1.bf16.msra.mxu0 %v417
    %639 = vmatprep.subr.bf16.mxu0 %v409
    %640 = vmatpush1.bf16.msra.mxu0 %v408
    %641 = vmatprep.subr.bf16.mxu0 %v400
    %642 = vmatpush1.bf16.msra.mxu0 %v399
    %643 = vmatprep.subr.bf16.mxu0 %v391
    %644 = vmatpush1.bf16.msra.mxu0 %v390
    %645 = vmatprep.subr.bf16.mxu0 %v382
    %646 = vmatpush1.bf16.msra.mxu0 %v381
    %647 = vmatprep.subr.bf16.mxu0 %v373
    %648 = vmatpush1.bf16.msra.mxu0 %v372
    %649 = vmatprep.subr.bf16.mxu0 0
    %650 = vmatpush2.bf16.msra.mxu0 0
    %651 = vmatprep.subr.bf16.mxu0 0
    %652 = vmatpush2.bf16.msra.mxu0 0
    %653 = vmatprep.subr.bf16.mxu0 0
    %654 = vmatpush2.bf16.msra.mxu0 0
    %655 = vmatprep.subr.bf16.mxu0 0
    %656 = vmatpush2.bf16.msra.mxu0 0
    %657 = vmatprep.subr.bf16.mxu0 0
    %658 = vmatpush2.bf16.msra.mxu0 0
    %659 = vmatprep.subr.bf16.mxu0 0
    %660 = vmatpush2.bf16.msra.mxu0 0
    %661 = vmatprep.subr.bf16.mxu0 0
    %662 = vmatpush2.bf16.msra.mxu0 0
    %663 = vmatprep.subr.bf16.mxu0 0
    %664 = vmatpush2.bf16.msra.mxu0 0
    %665 = vmatprep.mubr.bf16.mxu0 0
    %666 = vmatmul.mubr.bf16.gmra.mxu0 %v141
    %v667 = vpop.f32.mrf.mxu0
    %v668 = vadd.f32 0.0, %v667
    %v669 = vpop.f32.mrf.mxu0
    %v670 = vadd.f32 0.0, %v669
    %v671 = vpop.f32.mrf.mxu0
    %v672 = vpop.f32.mrf.mxu0
    %673 = vdwg.mxu0
    %674 = vmatprep.subr.bf16.mxu0 0
    %675 = vmatpush1.bf16.msra.mxu0 %v437
    %676 = vmatprep.subr.bf16.mxu0 0
    %677 = vmatpush1.bf16.msra.mxu0 %v428
    %678 = vmatprep.subr.bf16.mxu0 0
    %679 = vmatpush1.bf16.msra.mxu0 %v419
    %680 = vmatprep.subr.bf16.mxu0 0
    %681 = vmatpush1.bf16.msra.mxu0 %v410
    %682 = vmatprep.subr.bf16.mxu0 0
    %683 = vmatpush1.bf16.msra.mxu0 %v401
    %684 = vmatprep.subr.bf16.mxu0 0
    %685 = vmatpush1.bf16.msra.mxu0 %v392
    %686 = vmatprep.subr.bf16.mxu0 0
    %687 = vmatpush1.bf16.msra.mxu0 %v383
    %688 = vmatprep.subr.bf16.mxu0 0
    %689 = vmatpush1.bf16.msra.mxu0 %v374
    %690 = vmatprep.subr.bf16.mxu0 0
    %691 = vmatpush2.bf16.msra.mxu0 0
    %692 = vmatprep.subr.bf16.mxu0 0
    %693 = vmatpush2.bf16.msra.mxu0 0
    %694 = vmatprep.subr.bf16.mxu0 0
    %695 = vmatpush2.bf16.msra.mxu0 0
    %696 = vmatprep.subr.bf16.mxu0 0
    %697 = vmatpush2.bf16.msra.mxu0 0
    %698 = vmatprep.subr.bf16.mxu0 0
    %699 = vmatpush2.bf16.msra.mxu0 0
    %700 = vmatprep.subr.bf16.mxu0 0
    %701 = vmatpush2.bf16.msra.mxu0 0
    %702 = vmatprep.subr.bf16.mxu0 0
    %703 = vmatpush2.bf16.msra.mxu0 0
    %704 = vmatprep.subr.bf16.mxu0 0
    %705 = vmatpush2.bf16.msra.mxu0 0
    %706 = vmatprep.mubr.bf16.mxu0 0
    %707 = vmatmul.mubr.bf16.gmra.mxu0 %v141
    %v708 = vpop.f32.mrf.mxu0
    %v709 = vadd.f32 0.0, %v708
    %v710 = vpop.f32.mrf.mxu0
    %v711 = vpop.f32.mrf.mxu0
    %v712 = vpop.f32.mrf.mxu0
    %713 = vdwg.mxu0
    %vm714 = vcmask 1040384
    %v715 = vsel %vm714, %v545, 0.0
    %v716 = vrot.slane %v547, 7
    %vm717 = vcmask 1041409
    %v718 = vsel %vm717, %v716, %v715
    %v719 = vrot.slane %v586, 6
    %vm720 = vcmask 1042434
    %v721 = vsel %vm720, %v719, %v718
    %v722 = vrot.slane %v588, 5
    %vm723 = vcmask 1043459
    %v724 = vsel %vm723, %v722, %v721
    %v725 = vrot.slane %v627, 4
    %vm726 = vcmask 1044484
    %v727 = vsel %vm726, %v725, %v724
    %v728 = vrot.slane %v629, 3
    %vm729 = vcmask 1045509
    %v730 = vsel %vm729, %v728, %v727
    %v731 = vrot.slane %v668, 2
    %vm732 = vcmask 1046534
    %v733 = vsel %vm732, %v731, %v730
    %v734 = vrot.slane %v670, 1
    %vm735 = vcmask 1047559
    %v736 = vsel %vm735, %v734, %v733
    %v737 = vsel %vm714, %v709, 0.0
    %v738 = vsel %vm717, %v545, %v737
    %v739 = vsel %vm720, %v716, %v738
    %v740 = vsel %vm723, %v719, %v739
    %v741 = vsel %vm726, %v722, %v740
    %v742 = vsel %vm729, %v725, %v741
    %v743 = vsel %vm732, %v728, %v742
    %v744 = vsel %vm735, %v731, %v743
    %v745 = vsel %vm714, %v734, 0.0
    %v746 = vsel %vm717, %v709, %v745
    %v747 = vsel %vm720, %v545, %v746
    %v748 = vsel %vm723, %v716, %v747
    %v749 = vsel %vm726, %v719, %v748
    %v750 = vsel %vm729, %v722, %v749
    %v751 = vsel %vm732, %v725, %v750
    %v752 = vsel %vm735, %v728, %v751
    %v753 = vsel %vm714, %v731, 0.0
    %v754 = vsel %vm717, %v734, %v753
    %v755 = vsel %vm720, %v709, %v754
    %v756 = vsel %vm723, %v545, %v755
    %v757 = vsel %vm726, %v716, %v756
    %v758 = vsel %vm729, %v719, %v757
    %v759 = vsel %vm732, %v722, %v758
    %v760 = vsel %vm735, %v725, %v759
    %v761 = vsel %vm714, %v728, 0.0
    %v762 = vsel %vm717, %v731, %v761
    %v763 = vsel %vm720, %v734, %v762
    %v764 = vsel %vm723, %v709, %v763
    %v765 = vsel %vm726, %v545, %v764
    %v766 = vsel %vm729, %v716, %v765
    %v767 = vsel %vm732, %v719, %v766
    %v768 = vsel %vm735, %v722, %v767
    %v769 = vsel %vm714, %v725, 0.0
    %v770 = vsel %vm717, %v728, %v769
    %v771 = vsel %vm720, %v731, %v770
    %v772 = vsel %vm723, %v734, %v771
    %v773 = vsel %vm726, %v709, %v772
    %v774 = vsel %vm729, %v545, %v773
    %v775 = vsel %vm732, %v716, %v774
    %v776 = vsel %vm735, %v719, %v775
    %v777 = vsel %vm714, %v722, 0.0
    %v778 = vsel %vm717, %v725, %v777
    %v779 = vsel %vm720, %v728, %v778
    %v780 = vsel %vm723, %v731, %v779
    %v781 = vsel %vm726, %v734, %v780
    %v782 = vsel %vm729, %v709, %v781
    %v783 = vsel %vm732, %v545, %v782
    %v784 = vsel %vm735, %v716, %v783
    %v785 = vsel %vm714, %v719, 0.0
    %v786 = vsel %vm717, %v722, %v785
    %v787 = vsel %vm720, %v725, %v786
    %v788 = vsel %vm723, %v728, %v787
    %v789 = vsel %vm726, %v731, %v788
    %v790 = vsel %vm729, %v734, %v789
    %v791 = vsel %vm732, %v709, %v790
    %v792 = vsel %vm735, %v545, %v791
    %v793 = vsel %vm714, %v716, 0.0
    %v794 = vsel %vm717, %v719, %v793
    %v795 = vsel %vm720, %v722, %v794
    %v796 = vsel %vm723, %v725, %v795
    %v797 = vsel %vm726, %v728, %v796
    %v798 = vsel %vm729, %v731, %v797
    %v799 = vsel %vm732, %v734, %v798
    %v800 = vsel %vm735, %v709, %v799
    %v801 = vpack.c.bf16 %v744, %v736
    %v802 = vpack.c.bf16 %v760, %v752
    %v803 = vpack.c.bf16 %v776, %v768
    %v804 = vpack.c.bf16 %v792, %v784
    %v805 = vpack.c.bf16 %v800, %v800
    %s806 = smul.u32 4, 1
    %s807 = smul.u32 %s806, 1
    %s808 = sshll.u32 %s807, 4
    %809 = dma.done [#allocation3], %s808
    %v810 = vld [vmem:[#allocation2] sm:$0xf]
    %vm811 = vcmask 588800
    %v813 = vsel %vm811, %v810, 0
    %vm815 = vcmask 1043456
    %v817 = vsel %vm815, %v805, 0
    %819 = vmatprep.subr.bf16.mxu0 0
    %820 = vmatpush1.bf16.msra.mxu0 0
    %821 = vmatprep.subr.bf16.mxu0 0
    %822 = vmatpush1.bf16.msra.mxu0 0
    %823 = vmatprep.subr.bf16.mxu0 0
    %824 = vmatpush1.bf16.msra.mxu0 0
    %825 = vmatprep.subr.bf16.mxu0 0
    %826 = vmatpush1.bf16.msra.mxu0 %v817
    %827 = vmatprep.subr.bf16.mxu0 0
    %828 = vmatpush1.bf16.msra.mxu0 %v804
    %829 = vmatprep.subr.bf16.mxu0 0
    %830 = vmatpush1.bf16.msra.mxu0 %v803
    %831 = vmatprep.subr.bf16.mxu0 0
    %832 = vmatpush1.bf16.msra.mxu0 %v802
    %833 = vmatprep.subr.bf16.mxu0 0
    %834 = vmatpush1.bf16.msra.mxu0 %v801
    %835 = vmatprep.subr.bf16.mxu0 0
    %836 = vmatpush2.bf16.msra.mxu0 0
    %837 = vmatprep.subr.bf16.mxu0 0
    %838 = vmatpush2.bf16.msra.mxu0 0
    %839 = vmatprep.subr.bf16.mxu0 0
    %840 = vmatpush2.bf16.msra.mxu0 0
    %841 = vmatprep.subr.bf16.mxu0 0
    %842 = vmatpush2.bf16.msra.mxu0 0
    %843 = vmatprep.subr.bf16.mxu0 0
    %844 = vmatpush2.bf16.msra.mxu0 0
    %845 = vmatprep.subr.bf16.mxu0 0
    %846 = vmatpush2.bf16.msra.mxu0 0
    %847 = vmatprep.subr.bf16.mxu0 0
    %848 = vmatpush2.bf16.msra.mxu0 0
    %849 = vmatprep.subr.bf16.mxu0 0
    %850 = vmatpush2.bf16.msra.mxu0 0
    %851 = vmatprep.mubr.bf16.mxu0 0
    %852 = vmatmul.mubr.bf16.gmra.mxu0 %v813
    %v853 = vpop.f32.mrf.mxu0
    %v854 = vadd.f32 0.0, %v853
    %v855 = vpop.f32.mrf.mxu0
    %v856 = vpop.f32.mrf.mxu0
    %v857 = vpop.f32.mrf.mxu0
    %858 = vdwg.mxu0
    %v859 = vsub.f32 %v51, %v854
    %860 = vmax.xlane.f32.xlu0 %v859
    %v861 = vpop.xlane.xlu0 %860
    %v862 = vsub.f32 %v859, %v861
    %v863 = vmul.f32 %v862, 1.442695
    %v864 = vpow.pop %v863
    %865 = vadd.xlane.f32.xlu0 %v864
    %v866 = vpop.xlane.xlu0 %865
    %v867 = vrcp.pop %v866
    %v868 = vmul.f32 %v864, %v867
    %v869 = vpack.c.bf16 %v868, %v868
    %870 = vmatprep.subr.bf16.mxu0 %v430
    %871 = vmatpush1.bf16.msra.mxu0 %v429
    %872 = vmatprep.subr.bf16.mxu0 %v421
    %873 = vmatpush1.bf16.msra.mxu0 %v420
    %874 = vmatprep.subr.bf16.mxu0 %v412
    %875 = vmatpush1.bf16.msra.mxu0 %v411
    %876 = vmatprep.subr.bf16.mxu0 %v403
    %877 = vmatpush1.bf16.msra.mxu0 %v402
    %878 = vmatprep.subr.bf16.mxu0 %v394
    %879 = vmatpush1.bf16.msra.mxu0 %v393
    %880 = vmatprep.subr.bf16.mxu0 %v385
    %881 = vmatpush1.bf16.msra.mxu0 %v384
    %882 = vmatprep.subr.bf16.mxu0 %v376
    %883 = vmatpush1.bf16.msra.mxu0 %v375
    %884 = vmatprep.subr.bf16.mxu0 %v367
    %885 = vmatpush1.bf16.msra.mxu0 %v366
    %886 = vmatprep.subr.bf16.mxu0 0
    %887 = vmatpush2.bf16.msra.mxu0 0
    %888 = vmatprep.subr.bf16.mxu0 0
    %889 = vmatpush2.bf16.msra.mxu0 0
    %890 = vmatprep.subr.bf16.mxu0 0
    %891 = vmatpush2.bf16.msra.mxu0 0
    %892 = vmatprep.subr.bf16.mxu0 0
    %893 = vmatpush2.bf16.msra.mxu0 0
    %894 = vmatprep.subr.bf16.mxu0 0
    %895 = vmatpush2.bf16.msra.mxu0 0
    %896 = vmatprep.subr.bf16.mxu0 0
    %897 = vmatpush2.bf16.msra.mxu0 0
    %898 = vmatprep.subr.bf16.mxu0 0
    %899 = vmatpush2.bf16.msra.mxu0 0
    %900 = vmatprep.subr.bf16.mxu0 0
    %901 = vmatpush2.bf16.msra.mxu0 0
    %902 = vmatprep.mubr.bf16.mxu0 0
    %903 = vmatmul.mubr.bf16.gmra.mxu0 %v869
    %v904 = vpop.f32.mrf.mxu0
    %v905 = vadd.f32 0.0, %v904
    %v906 = vpop.f32.mrf.mxu0
    %v907 = vadd.f32 0.0, %v906
    %v908 = vpop.f32.mrf.mxu0
    %v909 = vpop.f32.mrf.mxu0
    %910 = vdwg.mxu0
    %911 = vmatprep.subr.bf16.mxu0 %v432
    %912 = vmatpush1.bf16.msra.mxu0 %v431
    %913 = vmatprep.subr.bf16.mxu0 %v423
    %914 = vmatpush1.bf16.msra.mxu0 %v422
    %915 = vmatprep.subr.bf16.mxu0 %v414
    %916 = vmatpush1.bf16.msra.mxu0 %v413
    %917 = vmatprep.subr.bf16.mxu0 %v405
    %918 = vmatpush1.bf16.msra.mxu0 %v404
    %919 = vmatprep.subr.bf16.mxu0 %v396
    %920 = vmatpush1.bf16.msra.mxu0 %v395
    %921 = vmatprep.subr.bf16.mxu0 %v387
    %922 = vmatpush1.bf16.msra.mxu0 %v386
    %923 = vmatprep.subr.bf16.mxu0 %v378
    %924 = vmatpush1.bf16.msra.mxu0 %v377
    %925 = vmatprep.subr.bf16.mxu0 %v369
    %926 = vmatpush1.bf16.msra.mxu0 %v368
    %927 = vmatprep.subr.bf16.mxu0 0
    %928 = vmatpush2.bf16.msra.mxu0 0
    %929 = vmatprep.subr.bf16.mxu0 0
    %930 = vmatpush2.bf16.msra.mxu0 0
    %931 = vmatprep.subr.bf16.mxu0 0
    %932 = vmatpush2.bf16.msra.mxu0 0
    %933 = vmatprep.subr.bf16.mxu0 0
    %934 = vmatpush2.bf16.msra.mxu0 0
    %935 = vmatprep.subr.bf16.mxu0 0
    %936 = vmatpush2.bf16.msra.mxu0 0
    %937 = vmatprep.subr.bf16.mxu0 0
    %938 = vmatpush2.bf16.msra.mxu0 0
    %939 = vmatprep.subr.bf16.mxu0 0
    %940 = vmatpush2.bf16.msra.mxu0 0
    %941 = vmatprep.subr.bf16.mxu0 0
    %942 = vmatpush2.bf16.msra.mxu0 0
    %943 = vmatprep.mubr.bf16.mxu0 0
    %944 = vmatmul.mubr.bf16.gmra.mxu0 %v869
    %v945 = vpop.f32.mrf.mxu0
    %v946 = vadd.f32 0.0, %v945
    %v947 = vpop.f32.mrf.mxu0
    %v948 = vadd.f32 0.0, %v947
    %v949 = vpop.f32.mrf.mxu0
    %v950 = vpop.f32.mrf.mxu0
    %951 = vdwg.mxu0
    %952 = vmatprep.subr.bf16.mxu0 %v434
    %953 = vmatpush1.bf16.msra.mxu0 %v433
    %954 = vmatprep.subr.bf16.mxu0 %v425
    %955 = vmatpush1.bf16.msra.mxu0 %v424
    %956 = vmatprep.subr.bf16.mxu0 %v416
    %957 = vmatpush1.bf16.msra.mxu0 %v415
    %958 = vmatprep.subr.bf16.mxu0 %v407
    %959 = vmatpush1.bf16.msra.mxu0 %v406
    %960 = vmatprep.subr.bf16.mxu0 %v398
    %961 = vmatpush1.bf16.msra.mxu0 %v397
    %962 = vmatprep.subr.bf16.mxu0 %v389
    %963 = vmatpush1.bf16.msra.mxu0 %v388
    %964 = vmatprep.subr.bf16.mxu0 %v380
    %965 = vmatpush1.bf16.msra.mxu0 %v379
    %966 = vmatprep.subr.bf16.mxu0 %v371
    %967 = vmatpush1.bf16.msra.mxu0 %v370
    %968 = vmatprep.subr.bf16.mxu0 0
    %969 = vmatpush2.bf16.msra.mxu0 0
    %970 = vmatprep.subr.bf16.mxu0 0
    %971 = vmatpush2.bf16.msra.mxu0 0
    %972 = vmatprep.subr.bf16.mxu0 0
    %973 = vmatpush2.bf16.msra.mxu0 0
    %974 = vmatprep.subr.bf16.mxu0 0
    %975 = vmatpush2.bf16.msra.mxu0 0
    %976 = vmatprep.subr.bf16.mxu0 0
    %977 = vmatpush2.bf16.msra.mxu0 0
    %978 = vmatprep.subr.bf16.mxu0 0
    %979 = vmatpush2.bf16.msra.mxu0 0
    %980 = vmatprep.subr.bf16.mxu0 0
    %981 = vmatpush2.bf16.msra.mxu0 0
    %982 = vmatprep.subr.bf16.mxu0 0
    %983 = vmatpush2.bf16.msra.mxu0 0
    %984 = vmatprep.mubr.bf16.mxu0 0
    %985 = vmatmul.mubr.bf16.gmra.mxu0 %v869
    %v986 = vpop.f32.mrf.mxu0
    %v987 = vadd.f32 0.0, %v986
    %v988 = vpop.f32.mrf.mxu0
    %v989 = vadd.f32 0.0, %v988
    %v990 = vpop.f32.mrf.mxu0
    %v991 = vpop.f32.mrf.mxu0
    %992 = vdwg.mxu0
    %993 = vmatprep.subr.bf16.mxu0 %v436
    %994 = vmatpush1.bf16.msra.mxu0 %v435
    %995 = vmatprep.subr.bf16.mxu0 %v427
    %996 = vmatpush1.bf16.msra.mxu0 %v426
    %997 = vmatprep.subr.bf16.mxu0 %v418
    %998 = vmatpush1.bf16.msra.mxu0 %v417
    %999 = vmatprep.subr.bf16.mxu0 %v409
    %1000 = vmatpush1.bf16.msra.mxu0 %v408
    %1001 = vmatprep.subr.bf16.mxu0 %v400
    %1002 = vmatpush1.bf16.msra.mxu0 %v399
    %1003 = vmatprep.subr.bf16.mxu0 %v391
    %1004 = vmatpush1.bf16.msra.mxu0 %v390
    %1005 = vmatprep.subr.bf16.mxu0 %v382
    %1006 = vmatpush1.bf16.msra.mxu0 %v381
    %1007 = vmatprep.subr.bf16.mxu0 %v373
    %1008 = vmatpush1.bf16.msra.mxu0 %v372
    %1009 = vmatprep.subr.bf16.mxu0 0
    %1010 = vmatpush2.bf16.msra.mxu0 0
    %1011 = vmatprep.subr.bf16.mxu0 0
    %1012 = vmatpush2.bf16.msra.mxu0 0
    %1013 = vmatprep.subr.bf16.mxu0 0
    %1014 = vmatpush2.bf16.msra.mxu0 0
    %1015 = vmatprep.subr.bf16.mxu0 0
    %1016 = vmatpush2.bf16.msra.mxu0 0
    %1017 = vmatprep.subr.bf16.mxu0 0
    %1018 = vmatpush2.bf16.msra.mxu0 0
    %1019 = vmatprep.subr.bf16.mxu0 0
    %1020 = vmatpush2.bf16.msra.mxu0 0
    %1021 = vmatprep.subr.bf16.mxu0 0
    %1022 = vmatpush2.bf16.msra.mxu0 0
    %1023 = vmatprep.subr.bf16.mxu0 0
    %1024 = vmatpush2.bf16.msra.mxu0 0
    %1025 = vmatprep.mubr.bf16.mxu0 0
    %1026 = vmatmul.mubr.bf16.gmra.mxu0 %v869
    %v1027 = vpop.f32.mrf.mxu0
    %v1028 = vadd.f32 0.0, %v1027
    %v1029 = vpop.f32.mrf.mxu0
    %v1030 = vadd.f32 0.0, %v1029
    %v1031 = vpop.f32.mrf.mxu0
    %v1032 = vpop.f32.mrf.mxu0
    %1033 = vdwg.mxu0
    %1034 = vmatprep.subr.bf16.mxu0 0
    %1035 = vmatpush1.bf16.msra.mxu0 %v437
    %1036 = vmatprep.subr.bf16.mxu0 0
    %1037 = vmatpush1.bf16.msra.mxu0 %v428
    %1038 = vmatprep.subr.bf16.mxu0 0
    %1039 = vmatpush1.bf16.msra.mxu0 %v419
    %1040 = vmatprep.subr.bf16.mxu0 0
    %1041 = vmatpush1.bf16.msra.mxu0 %v410
    %1042 = vmatprep.subr.bf16.mxu0 0
    %1043 = vmatpush1.bf16.msra.mxu0 %v401
    %1044 = vmatprep.subr.bf16.mxu0 0
    %1045 = vmatpush1.bf16.msra.mxu0 %v392
    %1046 = vmatprep.subr.bf16.mxu0 0
    %1047 = vmatpush1.bf16.msra.mxu0 %v383
    %1048 = vmatprep.subr.bf16.mxu0 0
    %1049 = vmatpush1.bf16.msra.mxu0 %v374
    %1050 = vmatprep.subr.bf16.mxu0 0
    %1051 = vmatpush2.bf16.msra.mxu0 0
    %1052 = vmatprep.subr.bf16.mxu0 0
    %1053 = vmatpush2.bf16.msra.mxu0 0
    %1054 = vmatprep.subr.bf16.mxu0 0
    %1055 = vmatpush2.bf16.msra.mxu0 0
    %1056 = vmatprep.subr.bf16.mxu0 0
    %1057 = vmatpush2.bf16.msra.mxu0 0
    %1058 = vmatprep.subr.bf16.mxu0 0
    %1059 = vmatpush2.bf16.msra.mxu0 0
    %1060 = vmatprep.subr.bf16.mxu0 0
    %1061 = vmatpush2.bf16.msra.mxu0 0
    %1062 = vmatprep.subr.bf16.mxu0 0
    %1063 = vmatpush2.bf16.msra.mxu0 0
    %1064 = vmatprep.subr.bf16.mxu0 0
    %1065 = vmatpush2.bf16.msra.mxu0 0
    %1066 = vmatprep.mubr.bf16.mxu0 0
    %1067 = vmatmul.mubr.bf16.gmra.mxu0 %v869
    %v1068 = vpop.f32.mrf.mxu0
    %v1069 = vadd.f32 0.0, %v1068
    %v1070 = vpop.f32.mrf.mxu0
    %v1071 = vpop.f32.mrf.mxu0
    %v1072 = vpop.f32.mrf.mxu0
    %1073 = vdwg.mxu0
    %v1074 = vsel %vm714, %v905, 0.0
    %v1075 = vrot.slane %v907, 7
    %v1076 = vsel %vm717, %v1075, %v1074
    %v1077 = vrot.slane %v946, 6
    %v1078 = vsel %vm720, %v1077, %v1076
    %v1079 = vrot.slane %v948, 5
    %v1080 = vsel %vm723, %v1079, %v1078
    %v1081 = vrot.slane %v987, 4
    %v1082 = vsel %vm726, %v1081, %v1080
    %v1083 = vrot.slane %v989, 3
    %v1084 = vsel %vm729, %v1083, %v1082
    %v1085 = vrot.slane %v1028, 2
    %v1086 = vsel %vm732, %v1085, %v1084
    %v1087 = vrot.slane %v1030, 1
    %v1088 = vsel %vm735, %v1087, %v1086
    %v1089 = vsel %vm714, %v1069, 0.0
    %v1090 = vsel %vm717, %v905, %v1089
    %v1091 = vsel %vm720, %v1075, %v1090
    %v1092 = vsel %vm723, %v1077, %v1091
    %v1093 = vsel %vm726, %v1079, %v1092
    %v1094 = vsel %vm729, %v1081, %v1093
    %v1095 = vsel %vm732, %v1083, %v1094
    %v1096 = vsel %vm735, %v1085, %v1095
    %v1097 = vsel %vm714, %v1087, 0.0
    %v1098 = vsel %vm717, %v1069, %v1097
    %v1099 = vsel %vm720, %v905, %v1098
    %v1100 = vsel %vm723, %v1075, %v1099
    %v1101 = vsel %vm726, %v1077, %v1100
    %v1102 = vsel %vm729, %v1079, %v1101
    %v1103 = vsel %vm732, %v1081, %v1102
    %v1104 = vsel %vm735, %v1083, %v1103
    %v1105 = vsel %vm714, %v1085, 0.0
    %v1106 = vsel %vm717, %v1087, %v1105
    %v1107 = vsel %vm720, %v1069, %v1106
    %v1108 = vsel %vm723, %v905, %v1107
    %v1109 = vsel %vm726, %v1075, %v1108
    %v1110 = vsel %vm729, %v1077, %v1109
    %v1111 = vsel %vm732, %v1079, %v1110
    %v1112 = vsel %vm735, %v1081, %v1111
    %v1113 = vsel %vm714, %v1083, 0.0
    %v1114 = vsel %vm717, %v1085, %v1113
    %v1115 = vsel %vm720, %v1087, %v1114
    %v1116 = vsel %vm723, %v1069, %v1115
    %v1117 = vsel %vm726, %v905, %v1116
    %v1118 = vsel %vm729, %v1075, %v1117
    %v1119 = vsel %vm732, %v1077, %v1118
    %v1120 = vsel %vm735, %v1079, %v1119
    %v1121 = vsel %vm714, %v1081, 0.0
    %v1122 = vsel %vm717, %v1083, %v1121
    %v1123 = vsel %vm720, %v1085, %v1122
    %v1124 = vsel %vm723, %v1087, %v1123
    %v1125 = vsel %vm726, %v1069, %v1124
    %v1126 = vsel %vm729, %v905, %v1125
    %v1127 = vsel %vm732, %v1075, %v1126
    %v1128 = vsel %vm735, %v1077, %v1127
    %v1129 = vsel %vm714, %v1079, 0.0
    %v1130 = vsel %vm717, %v1081, %v1129
    %v1131 = vsel %vm720, %v1083, %v1130
    %v1132 = vsel %vm723, %v1085, %v1131
    %v1133 = vsel %vm726, %v1087, %v1132
    %v1134 = vsel %vm729, %v1069, %v1133
    %v1135 = vsel %vm732, %v905, %v1134
    %v1136 = vsel %vm735, %v1075, %v1135
    %v1137 = vsel %vm714, %v1077, 0.0
    %v1138 = vsel %vm717, %v1079, %v1137
    %v1139 = vsel %vm720, %v1081, %v1138
    %v1140 = vsel %vm723, %v1083, %v1139
    %v1141 = vsel %vm726, %v1085, %v1140
    %v1142 = vsel %vm729, %v1087, %v1141
    %v1143 = vsel %vm732, %v1069, %v1142
    %v1144 = vsel %vm735, %v905, %v1143
    %v1145 = vsel %vm714, %v1075, 0.0
    %v1146 = vsel %vm717, %v1077, %v1145
    %v1147 = vsel %vm720, %v1079, %v1146
    %v1148 = vsel %vm723, %v1081, %v1147
    %v1149 = vsel %vm726, %v1083, %v1148
    %v1150 = vsel %vm729, %v1085, %v1149
    %v1151 = vsel %vm732, %v1087, %v1150
    %v1152 = vsel %vm735, %v1069, %v1151
    %v1153 = vpack.c.bf16 %v1096, %v1088
    %v1154 = vpack.c.bf16 %v1112, %v1104
    %v1155 = vpack.c.bf16 %v1128, %v1120
    %v1156 = vpack.c.bf16 %v1144, %v1136
    %v1157 = vpack.c.bf16 %v1152, %v1152
    %v1159 = vsel %vm815, %v1157, 0
    %1161 = vmatprep.subr.bf16.mxu0 0
    %1162 = vmatpush1.bf16.msra.mxu0 0
    %1163 = vmatprep.subr.bf16.mxu0 0
    %1164 = vmatpush1.bf16.msra.mxu0 0
    %1165 = vmatprep.subr.bf16.mxu0 0
    %1166 = vmatpush1.bf16.msra.mxu0 0
    %1167 = vmatprep.subr.bf16.mxu0 0
    %1168 = vmatpush1.bf16.msra.mxu0 %v1159
    %1169 = vmatprep.subr.bf16.mxu0 0
    %1170 = vmatpush1.bf16.msra.mxu0 %v1156
    %1171 = vmatprep.subr.bf16.mxu0 0
    %1172 = vmatpush1.bf16.msra.mxu0 %v1155
    %1173 = vmatprep.subr.bf16.mxu0 0
    %1174 = vmatpush1.bf16.msra.mxu0 %v1154
    %1175 = vmatprep.subr.bf16.mxu0 0
    %1176 = vmatpush1.bf16.msra.mxu0 %v1153
    %1177 = vmatprep.subr.bf16.mxu0 0
    %1178 = vmatpush2.bf16.msra.mxu0 0
    %1179 = vmatprep.subr.bf16.mxu0 0
    %1180 = vmatpush2.bf16.msra.mxu0 0
    %1181 = vmatprep.subr.bf16.mxu0 0
    %1182 = vmatpush2.bf16.msra.mxu0 0
    %1183 = vmatprep.subr.bf16.mxu0 0
    %1184 = vmatpush2.bf16.msra.mxu0 0
    %1185 = vmatprep.subr.bf16.mxu0 0
    %1186 = vmatpush2.bf16.msra.mxu0 0
    %1187 = vmatprep.subr.bf16.mxu0 0
    %1188 = vmatpush2.bf16.msra.mxu0 0
    %1189 = vmatprep.subr.bf16.mxu0 0
    %1190 = vmatpush2.bf16.msra.mxu0 0
    %1191 = vmatprep.subr.bf16.mxu0 0
    %1192 = vmatpush2.bf16.msra.mxu0 0
    %1193 = vmatprep.mubr.bf16.mxu0 0
    %1194 = vmatmul.mubr.bf16.gmra.mxu0 %v813
    %v1195 = vpop.f32.mrf.mxu0
    %v1196 = vadd.f32 0.0, %v1195
    %v1197 = vpop.f32.mrf.mxu0
    %v1198 = vpop.f32.mrf.mxu0
    %v1199 = vpop.f32.mrf.mxu0
    %1200 = vdwg.mxu0
    %v1201 = vsub.f32 %v51, %v1196
    %1202 = vst [vmem:[#allocation9] sm:$0xff] %v1201
    // Predicated region
    $region22: #{tpu_custom_call.1} parent=1 // pred_check
      _
    $region23: #{tpu_custom_call.1} parent=1 // pred_check_branch
      %1204 = sbr.rel (0) target = $region25
    $region24: #{tpu_custom_call.1} parent=1 // pred_region
      %s1206 = ssub.s32 128, 128
      %1207 = vsyncadd [#allocation6], %s1206
      %s1209 = sshll.u32 [#allocation9], 4
      %s1210 = int_to_ptr.vmem [resolvable:$true] %s1209
      %1212 = dma.vmem_to_hbm [thread:$0]  %s1210, 128, %s3, [#allocation6]
    $region25: #{tpu_custom_call.1} parent=1 // pred_fallthru
      _
    // Predicated region
    $region26: #{tpu_custom_call.1} parent=1 // pred_check
      _
    $region27: #{tpu_custom_call.1} parent=1 // pred_check_branch
      %1214 = sbr.rel (0) target = $region29
    $region28: #{tpu_custom_call.1} parent=1 // pred_region
      %1215 = dma.done [#allocation6], 128
    $region29: #{tpu_custom_call.1} parent=1 // pred_fallthru
      _
    %1216 = vsyncpa [#allocation5], 1
    %1217 = vsyncpa [#allocation8], 1
    %1218 = vsyncpa [#allocation6], 1
  %1219 = vsyncmov [#allocation3]
  %s1220 = vpop.sfrf %1219
  %p1221 = scmp.eq.s32.totalorder %s1220, 0
  %p1222 = pneg %p1221
  %1224 = shalt.err (%p1222)

</llo_original>
